<compile_context>
chip_gen: v5e
topology: v5e:2x2
jax: 0.10.0
libtpu: 0.0.40
codegen_flags: <defaults>
</compile_context>

<pallas_src>
import functools

import jax
import jax.numpy as jnp
from jax.experimental import pallas as pl
from jax.experimental.pallas import tpu as pltpu


# ----------------------------------------------------------------------------
# Chip detection (best effort, never fails).
# ----------------------------------------------------------------------------
def _device_kind():
    try:
        return jax.devices()[0].device_kind.lower()
    except Exception:  # pragma: no cover - defensive
        return ""


def _chip_flags():
    kind = _device_kind()
    is_v7 = ("v7" in kind) or ("7x" in kind)
    use_bf16 = is_v7 or ("v6" in kind)   # bf16 MXU operands on v6e / v7x only
    return is_v7, use_bf16


def _round_up(n, m):
    return ((n + m - 1) // m) * m


# ----------------------------------------------------------------------------
# Kernel
# ----------------------------------------------------------------------------
def _rnn_kernel(num_layers, t_tile, b_chunk, out_dim, mm_dtype, *refs):
    """refs = (x_ref,
               W_ff_0, W_rec_0, b_0, ..., W_ff_{L-1}, W_rec_{L-1}, b_{L-1},
               W_out, b_out,
               out_ref, h_scratch_ref)

    x_ref   : (1, t_tile*b_chunk, E)  time-major rows (row = t*b_chunk + i)
    out_ref : (1, b_chunk, t_tile*O)  packed, lane-dense output block
    h_ref   : (L, b_chunk, H) f32     hidden-state carry across time tiles
    """
    x_ref = refs[0]
    layer_refs = refs[1:1 + 3 * num_layers]
    w_out_ref = refs[1 + 3 * num_layers]
    b_out_ref = refs[2 + 3 * num_layers]
    out_ref = refs[3 + 3 * num_layers]
    h_ref = refs[4 + 3 * num_layers]

    # Zero initial hidden states at the first time tile of each batch chunk
    # (init_zeros=True in the PyTorch forward).
    @pl.when(pl.program_id(1) == 0)
    def _():
        h_ref[...] = jnp.zeros_like(h_ref)

    # `prev` holds the previous layer's activations for the WHOLE tile,
    # time-major: row t*b_chunk + i  ->  (timestep t, batch element i).
    prev = x_ref[0].astype(mm_dtype)                       # (t_tile*b_chunk, in)

    for k in range(num_layers):
        w_ff = layer_refs[3 * k][...]                      # (in, H)  mm_dtype
        w_rec = layer_refs[3 * k + 1][...]                 # (H,  H)  mm_dtype
        b_fused = layer_refs[3 * k + 2][...]               # (1,  H)  f32 (b_ff + b_rec)

        # Fully parallel feed-forward projection for every timestep of the
        # tile: one MXU matmul with M = t_tile*b_chunk (f32 accumulation).
        ff = jnp.dot(prev, w_ff, preferred_element_type=jnp.float32) + b_fused

        # Serial recurrence: only h @ W_rec + tanh stays per-timestep.
        # TODO(synk): for very long time tiles switch this static unroll to a
        # lax.fori_loop(..., unroll=4..8) writing into a VMEM scratch to bound
        # vreg live ranges; t_tile is capped at 32 here so the unroll is fine.
        h = h_ref[k]                                       # (b_chunk, H) f32 carry
        hs = []
        for t in range(t_tile):
            z = ff[t * b_chunk:(t + 1) * b_chunk, :] + jnp.dot(
                h.astype(mm_dtype), w_rec, preferred_element_type=jnp.float32)
            h = jnp.tanh(z)                                # f32 elementwise
            hs.append(h)
        h_ref[k] = h                                       # carry to next tile

        prev = jnp.concatenate(hs, axis=0).astype(mm_dtype)  # (t_tile*b_chunk, H)

    # Epilogue: fused H -> O projection, one matmul over the whole tile.
    y = jnp.dot(prev, w_out_ref[...],
                preferred_element_type=jnp.float32) + b_out_ref[...]
    y = y.astype(out_ref.dtype)                            # (t_tile*b_chunk, O)

    # Pack the tile's outputs along lanes: column t*O + o of the out block.
    # These are small VMEM stores; the HBM writeback DMA is one lane-dense
    # (b_chunk, t_tile*O) block per tile.
    for t in range(t_tile):
        out_ref[0, :, t * out_dim:(t + 1) * out_dim] = \
            y[t * b_chunk:(t + 1) * b_chunk, :]


# ----------------------------------------------------------------------------
# Parameter prep
# ----------------------------------------------------------------------------
def _prep_params(params, num_layers, mm_dtype):
    """Split flat params into per-layer (W_ff, W_rec, fused bias) + output head.
    Weights are cast to the MXU operand dtype; biases stay f32 (added after the
    f32-accumulated matmul)."""
    idx = 0
    W_ih, b_ih = params[idx], params[idx + 1]; idx += 2
    W_hh, b_hh = params[idx], params[idx + 1]; idx += 2
    layers = [(W_ih.astype(mm_dtype), W_hh.astype(mm_dtype),
               (b_ih + b_hh).astype(jnp.float32))]
    for _ in range(num_layers - 1):
        W_f, b_f = params[idx], params[idx + 1]; idx += 2
        W_r, b_r = params[idx], params[idx + 1]; idx += 2
        layers.append((W_f.astype(mm_dtype), W_r.astype(mm_dtype),
                       (b_f + b_r).astype(jnp.float32)))
    W_out, b_out = params[idx], params[idx + 1]
    return layers, W_out.astype(mm_dtype), b_out.astype(jnp.float32)


def _pick_time_tiling(T, output_dim, max_tile=32):
    """Choose (t_tile, T_pad).  Padded T is always a multiple of t_tile; the
    packed output block lane-width t_tile*O is a multiple of 128 whenever the
    grid has more than one time tile (unmasked, lane-dense writeback)."""
    T8 = _round_up(T, 8)
    if T8 <= max_tile:
        return T8, T8                       # single tile spans the full T axis
    best = None
    for cand in range(8, max_tile + 1, 8):
        if (cand * output_dim) % 128 == 0:
            best = cand                     # keep the largest legal candidate
    if best is None:
        return T8, T8                       # fallback: single full-T tile
    return best, _round_up(T, best)


# ----------------------------------------------------------------------------
# Wrapper
# ----------------------------------------------------------------------------
def rnn_forward(embeddings, params, *, num_layers, hidden_dim, output_dim):
    """embeddings: (B, T, E) float32; params: flat list of 2-D weights/biases
    (layout of make_params / rnn_reference).  Returns (B, T, O)."""
    B, T, E = embeddings.shape
    H, O = hidden_dim, output_dim

    is_v7, use_bf16 = _chip_flags()
    mm_dtype = jnp.bfloat16 if use_bf16 else jnp.float32

    layers, W_out, b_out = _prep_params(params, num_layers, mm_dtype)

    # --- tiling / padding -----------------------------------------------
    t_tile, T_pad = _pick_time_tiling(T, O)
    B_pad = _round_up(B, 8)
    # Split the batch across TensorCores only on 2-TC parts (v7x); on
    # v5e/v6e (1 TC) a split would just halve the matmul M dimension.
    batch_chunks = 2 if (is_v7 and B_pad % 16 == 0) else 1
    b_chunk = B_pad // batch_chunks
    n_t_tiles = T_pad // t_tile

    # --- wrapper-side layout plumbing (cheap XLA ops) ---------------------
    # Time-major + pre-flattened so every in-kernel matmul is 2-D and the
    # per-timestep slices are contiguous, sublane-aligned blocks of b_chunk rows.
    x = embeddings.astype(jnp.float32)
    x = jnp.transpose(x, (1, 0, 2))                               # (T, B, E)
    x = jnp.pad(x, ((0, T_pad - T), (0, B_pad - B), (0, 0)))      # (T_pad, B_pad, E)
    x = x.reshape(T_pad, batch_chunks, b_chunk, E)
    x = jnp.transpose(x, (1, 0, 2, 3)).reshape(batch_chunks, T_pad * b_chunk, E)

    flat_weights = []
    for w_ff, w_rec, b_f in layers:
        flat_weights += [w_ff, w_rec, b_f]
    flat_weights += [W_out, b_out]

    # --- specs -------------------------------------------------------------
    x_spec = pl.BlockSpec((1, t_tile * b_chunk, E), lambda b, tb: (b, tb, 0))
    out_spec = pl.BlockSpec((1, b_chunk, t_tile * O), lambda b, tb: (b, 0, tb))
    # Constant weights: untiled VMEM residents -> no double-buffering.
    w_spec = pl.BlockSpec(memory_space=pltpu.MemorySpace.VMEM)
    in_specs = [x_spec] + [w_spec] * len(flat_weights)

    # --- VMEM budget / cost hint --------------------------------------------
    weight_bytes = sum(int(w.size) * w.dtype.itemsize for w in flat_weights)
    x_block_bytes = t_tile * b_chunk * E * 4
    out_block_bytes = b_chunk * t_tile * O * 4
    scratch_bytes = num_layers * b_chunk * H * 4
    needed = weight_bytes + 2 * (x_block_bytes + out_block_bytes) + scratch_bytes
    vmem_cap = (48 << 20) if is_v7 else (100 << 20)   # v7x: 64 MiB physical
    vmem_limit = int(min(vmem_cap, max(2 * needed, 16 << 20)))

    flops = 2 * B * T * (E * H + H * H + (num_layers - 1) * 2 * H * H + H * O)
    bytes_accessed = (B_pad * T_pad * E * 4            # input
                      + weight_bytes                   # resident weights
                      + B_pad * T_pad * O * 4)         # output
    cost = pl.CostEstimate(flops=int(flops),
                           transcendentals=int(B * T * H * num_layers),
                           bytes_accessed=int(bytes_accessed))

    kernel = functools.partial(_rnn_kernel, num_layers, t_tile, b_chunk, O,
                               mm_dtype)

    out = pl.pallas_call(
        kernel,
        out_shape=jax.ShapeDtypeStruct((batch_chunks, b_chunk, T_pad * O),
                                       jnp.float32),
        grid_spec=pltpu.PrefetchScalarGridSpec(
            num_scalar_prefetch=0,
            grid=(batch_chunks, n_t_tiles),
            in_specs=in_specs,
            out_specs=out_spec,
            scratch_shapes=[pltpu.VMEM((num_layers, b_chunk, H), jnp.float32)],
        ),
        compiler_params=pltpu.CompilerParams(
            # Batch chunks are independent; the time axis carries the recurrence.
            dimension_semantics=("parallel", "arbitrary"),
            vmem_limit_bytes=vmem_limit,
        ),
        cost_estimate=cost,
    )(x, *flat_weights)

    out = out.reshape(B_pad, T_pad, O)[:B, :T, :]
    return out.astype(embeddings.dtype)


# ----------------------------------------------------------------------------
# Pure-JAX reference (matches the PyTorch forward pass)
# ----------------------------------------------------------------------------
def rnn_reference(embeddings, params, *, num_layers, hidden_dim, output_dim):
    B, T, E = embeddings.shape
    H = hidden_dim
    idx = 0
    W_ih, b_ih = params[idx], params[idx + 1]; idx += 2
    W_hh, b_hh = params[idx], params[idx + 1]; idx += 2
    layer_ws = []
    for _ in range(num_layers - 1):
        W_f, b_f = params[idx], params[idx + 1]; idx += 2
        W_r, b_r = params[idx], params[idx + 1]; idx += 2
        layer_ws.append((W_f, b_f, W_r, b_r))
    W_out, b_out = params[idx], params[idx + 1]

    h = [jnp.zeros((B, H), jnp.float32) for _ in range(num_layers)]
    outs = []
    for t in range(T):
        x_t = embeddings[:, t, :]
        h[0] = jnp.tanh(x_t @ W_ih + b_ih + h[0] @ W_hh + b_hh)
        for k in range(1, num_layers):
            W_f, b_f, W_r, b_r = layer_ws[k - 1]
            h[k] = jnp.tanh(h[k - 1] @ W_f + b_f + h[k] @ W_r + b_r)
        outs.append(h[-1] @ W_out + b_out)
    return jnp.stack(outs, axis=1)                          # (B, T, O)


def make_params(key, embedding_dim, hidden_dim, output_dim, num_layers):
    """Deterministic synthetic parameters.  Weights stored as (in_dim, out_dim)
    (i.e. transposed vs. torch.nn.Linear), biases as (1, out_dim)."""
    def linear(k, fan_in, fan_out):
        kw, kb = jax.random.split(k)
        scale = (2.0 / (fan_in + fan_out)) ** 0.5           # xavier-normal-ish
        W = scale * jax.random.normal(kw, (fan_in, fan_out), jnp.float32)
        b = 0.1 * jax.random.normal(kb, (1, fan_out), jnp.float32)
        return W, b

    keys = jax.random.split(key, 3 + 2 * (num_layers - 1))
    params = []
    params += list(linear(keys[0], embedding_dim, hidden_dim))   # input_hidden
    params += list(linear(keys[1], hidden_dim, hidden_dim))      # hidden_hidden
    for i in range(num_layers - 1):
        params += list(linear(keys[2 + 2 * i], hidden_dim, hidden_dim))  # hidden_layers[i]
        params += list(linear(keys[3 + 2 * i], hidden_dim, hidden_dim))  # recur_layers[i]
    params += list(linear(keys[-1], hidden_dim, output_dim))     # hidden_output
    return params


if __name__ == "__main__":
    # Small shapes consistent with the module's forward signature.
    batch, seq_len = 8, 8
    embedding_dim, hidden_dim, output_dim, num_layers = 32, 32, 16, 2

    key = jax.random.PRNGKey(0)
    k_emb, k_par = jax.random.split(key)
    embeddings = jax.random.normal(
        k_emb, (batch, seq_len, embedding_dim), jnp.float32)
    params = make_params(k_par, embedding_dim, hidden_dim, output_dim, num_layers)

    out = rnn_forward(
        embeddings, params,
        num_layers=num_layers, hidden_dim=hidden_dim, output_dim=output_dim)
    out = jax.block_until_ready(out)

    ref = rnn_reference(
        embeddings, params,
        num_layers=num_layers, hidden_dim=hidden_dim, output_dim=output_dim)

    assert out.shape == (batch, seq_len, output_dim), out.shape
    _, _use_bf16 = _chip_flags()
    tol = 3e-2 if _use_bf16 else 1e-3      # bf16 MXU operands on v6e/v7x
    assert jnp.allclose(out, ref, atol=tol, rtol=tol), float(
        jnp.max(jnp.abs(out - ref)))

    print("KERNEL_OK")
</pallas_src>

<mosaic_0001>
module attributes {stable_mosaic.version = 11 : i64} {
  func.func @_rnn_kernel(%arg0: i32, %arg1: i32, %arg2: memref<1x64x32xf32, #tpu.memory_space<vmem>>, %arg3: memref<32x32xf32, #tpu.memory_space<vmem>>, %arg4: memref<32x32xf32, #tpu.memory_space<vmem>>, %arg5: memref<1x32xf32, #tpu.memory_space<vmem>>, %arg6: memref<32x32xf32, #tpu.memory_space<vmem>>, %arg7: memref<32x32xf32, #tpu.memory_space<vmem>>, %arg8: memref<1x32xf32, #tpu.memory_space<vmem>>, %arg9: memref<32x16xf32, #tpu.memory_space<vmem>>, %arg10: memref<1x16xf32, #tpu.memory_space<vmem>>, %arg11: memref<1x8x128xf32, #tpu.memory_space<vmem>>, %arg12: memref<2x8x32xf32, #tpu.memory_space<vmem>>) attributes {dimension_semantics = [#tpu.dimension_semantics<parallel>, #tpu.dimension_semantics<arbitrary>], iteration_bounds = array<i64: 1, 1>, scalar_prefetch = 0 : i64, scratch_operands = 1 : i64, tpu.core_type = #tpu.core_type<tc>, window_params = [{transform_indices = @transform_0, window_bounds = array<i64: 1, 64, 32>}, {pipeline_mode = #tpu.pipeline_mode<synchronous>, transform_indices = @transform_1, window_bounds = array<i64: 32, 32>}, {pipeline_mode = #tpu.pipeline_mode<synchronous>, transform_indices = @transform_2, window_bounds = array<i64: 32, 32>}, {pipeline_mode = #tpu.pipeline_mode<synchronous>, transform_indices = @transform_3, window_bounds = array<i64: 1, 32>}, {pipeline_mode = #tpu.pipeline_mode<synchronous>, transform_indices = @transform_4, window_bounds = array<i64: 32, 32>}, {pipeline_mode = #tpu.pipeline_mode<synchronous>, transform_indices = @transform_5, window_bounds = array<i64: 32, 32>}, {pipeline_mode = #tpu.pipeline_mode<synchronous>, transform_indices = @transform_6, window_bounds = array<i64: 1, 32>}, {pipeline_mode = #tpu.pipeline_mode<synchronous>, transform_indices = @transform_7, window_bounds = array<i64: 32, 16>}, {pipeline_mode = #tpu.pipeline_mode<synchronous>, transform_indices = @transform_8, window_bounds = array<i64: 1, 16>}, {transform_indices = @transform_9, window_bounds = array<i64: 1, 8, 128>}]} {
    %c0_i32 = arith.constant 0 : i32
    %0 = arith.cmpi eq, %arg1, %c0_i32 : i32
    %1 = arith.extui %0 : i1 to i32
    %c0_i32_0 = arith.constant 0 : i32
    %2 = arith.cmpi ne, %1, %c0_i32_0 : i32
    scf.if %2 {
      %cst_65 = arith.constant 0.000000e+00 : f32
      %130 = vector.broadcast %cst_65 : f32 to vector<2x8x32xf32>
      %c0_66 = arith.constant 0 : index
      %c0_67 = arith.constant 0 : index
      %c0_68 = arith.constant 0 : index
      %131 = vector.load %arg12[%c0_66, %c0_67, %c0_68] : memref<2x8x32xf32, #tpu.memory_space<vmem>>, vector<2x8x32xf32>
      tpu.vector_store %arg12[%c0_66, %c0_67, %c0_68], %130 {strides = array<i32>} : memref<2x8x32xf32, #tpu.memory_space<vmem>>, vector<2x8x32xf32>,
    } else {
    }
    %c0 = arith.constant 0 : index
    %c0_1 = arith.constant 0 : index
    %c0_2 = arith.constant 0 : index
    %3 = vector.load %arg2[%c0, %c0_1, %c0_2] : memref<1x64x32xf32, #tpu.memory_space<vmem>>, vector<1x64x32xf32>
    %4 = vector.shape_cast %3 : vector<1x64x32xf32> to vector<64x32xf32>
    %c0_3 = arith.constant 0 : index
    %c0_4 = arith.constant 0 : index
    %5 = vector.load %arg3[%c0_3, %c0_4] : memref<32x32xf32, #tpu.memory_space<vmem>>, vector<32x32xf32>
    %c0_5 = arith.constant 0 : index
    %c0_6 = arith.constant 0 : index
    %6 = vector.load %arg4[%c0_5, %c0_6] : memref<32x32xf32, #tpu.memory_space<vmem>>, vector<32x32xf32>
    %c0_7 = arith.constant 0 : index
    %c0_8 = arith.constant 0 : index
    %7 = vector.load %arg5[%c0_7, %c0_8] : memref<1x32xf32, #tpu.memory_space<vmem>>, vector<1x32xf32>
    %cst = arith.constant dense<0.000000e+00> : vector<64x32xf32>
    %8 = tpu.matmul %4, %5, %cst {dimension_numbers = #tpu.dot_dimension_numbers<[1], [0], [0], [1], [0, 0, 1, 1], [], []>} : vector<64x32xf32>, vector<32x32xf32>, vector<64x32xf32> -> vector<64x32xf32>
    %9 = vector.broadcast %7 : vector<1x32xf32> to vector<64x32xf32>
    %10 = arith.addf %8, %9 : vector<64x32xf32>
    %c0_9 = arith.constant 0 : index
    %c0_10 = arith.constant 0 : index
    %c0_11 = arith.constant 0 : index
    %11 = vector.load %arg12[%c0_9, %c0_10, %c0_11] : memref<2x8x32xf32, #tpu.memory_space<vmem>>, vector<1x8x32xf32>
    %12 = vector.shape_cast %11 : vector<1x8x32xf32> to vector<8x32xf32>
    %13 = vector.extract_strided_slice %10 {offsets = [0, 0], sizes = [8, 32], strides = [1, 1]} : vector<64x32xf32> to vector<8x32xf32>
    %cst_12 = arith.constant dense<0.000000e+00> : vector<8x32xf32>
    %14 = tpu.matmul %12, %6, %cst_12 {dimension_numbers = #tpu.dot_dimension_numbers<[1], [0], [0], [1], [0, 0, 1, 1], [], []>} : vector<8x32xf32>, vector<32x32xf32>, vector<8x32xf32> -> vector<8x32xf32>
    %15 = arith.addf %13, %14 : vector<8x32xf32>
    %16 = math.tanh %15 : vector<8x32xf32>
    %17 = vector.extract_strided_slice %10 {offsets = [8, 0], sizes = [8, 32], strides = [1, 1]} : vector<64x32xf32> to vector<8x32xf32>
    %cst_13 = arith.constant dense<0.000000e+00> : vector<8x32xf32>
    %18 = tpu.matmul %16, %6, %cst_13 {dimension_numbers = #tpu.dot_dimension_numbers<[1], [0], [0], [1], [0, 0, 1, 1], [], []>} : vector<8x32xf32>, vector<32x32xf32>, vector<8x32xf32> -> vector<8x32xf32>
    %19 = arith.addf %17, %18 : vector<8x32xf32>
    %20 = math.tanh %19 : vector<8x32xf32>
    %21 = vector.extract_strided_slice %10 {offsets = [16, 0], sizes = [8, 32], strides = [1, 1]} : vector<64x32xf32> to vector<8x32xf32>
    %cst_14 = arith.constant dense<0.000000e+00> : vector<8x32xf32>
    %22 = tpu.matmul %20, %6, %cst_14 {dimension_numbers = #tpu.dot_dimension_numbers<[1], [0], [0], [1], [0, 0, 1, 1], [], []>} : vector<8x32xf32>, vector<32x32xf32>, vector<8x32xf32> -> vector<8x32xf32>
    %23 = arith.addf %21, %22 : vector<8x32xf32>
    %24 = math.tanh %23 : vector<8x32xf32>
    %25 = vector.extract_strided_slice %10 {offsets = [24, 0], sizes = [8, 32], strides = [1, 1]} : vector<64x32xf32> to vector<8x32xf32>
    %cst_15 = arith.constant dense<0.000000e+00> : vector<8x32xf32>
    %26 = tpu.matmul %24, %6, %cst_15 {dimension_numbers = #tpu.dot_dimension_numbers<[1], [0], [0], [1], [0, 0, 1, 1], [], []>} : vector<8x32xf32>, vector<32x32xf32>, vector<8x32xf32> -> vector<8x32xf32>
    %27 = arith.addf %25, %26 : vector<8x32xf32>
    %28 = math.tanh %27 : vector<8x32xf32>
    %29 = vector.extract_strided_slice %10 {offsets = [32, 0], sizes = [8, 32], strides = [1, 1]} : vector<64x32xf32> to vector<8x32xf32>
    %cst_16 = arith.constant dense<0.000000e+00> : vector<8x32xf32>
    %30 = tpu.matmul %28, %6, %cst_16 {dimension_numbers = #tpu.dot_dimension_numbers<[1], [0], [0], [1], [0, 0, 1, 1], [], []>} : vector<8x32xf32>, vector<32x32xf32>, vector<8x32xf32> -> vector<8x32xf32>
    %31 = arith.addf %29, %30 : vector<8x32xf32>
    %32 = math.tanh %31 : vector<8x32xf32>
    %33 = vector.extract_strided_slice %10 {offsets = [40, 0], sizes = [8, 32], strides = [1, 1]} : vector<64x32xf32> to vector<8x32xf32>
    %cst_17 = arith.constant dense<0.000000e+00> : vector<8x32xf32>
    %34 = tpu.matmul %32, %6, %cst_17 {dimension_numbers = #tpu.dot_dimension_numbers<[1], [0], [0], [1], [0, 0, 1, 1], [], []>} : vector<8x32xf32>, vector<32x32xf32>, vector<8x32xf32> -> vector<8x32xf32>
    %35 = arith.addf %33, %34 : vector<8x32xf32>
    %36 = math.tanh %35 : vector<8x32xf32>
    %37 = vector.extract_strided_slice %10 {offsets = [48, 0], sizes = [8, 32], strides = [1, 1]} : vector<64x32xf32> to vector<8x32xf32>
    %cst_18 = arith.constant dense<0.000000e+00> : vector<8x32xf32>
    %38 = tpu.matmul %36, %6, %cst_18 {dimension_numbers = #tpu.dot_dimension_numbers<[1], [0], [0], [1], [0, 0, 1, 1], [], []>} : vector<8x32xf32>, vector<32x32xf32>, vector<8x32xf32> -> vector<8x32xf32>
    %39 = arith.addf %37, %38 : vector<8x32xf32>
    %40 = math.tanh %39 : vector<8x32xf32>
    %41 = vector.extract_strided_slice %10 {offsets = [56, 0], sizes = [8, 32], strides = [1, 1]} : vector<64x32xf32> to vector<8x32xf32>
    %cst_19 = arith.constant dense<0.000000e+00> : vector<8x32xf32>
    %42 = tpu.matmul %40, %6, %cst_19 {dimension_numbers = #tpu.dot_dimension_numbers<[1], [0], [0], [1], [0, 0, 1, 1], [], []>} : vector<8x32xf32>, vector<32x32xf32>, vector<8x32xf32> -> vector<8x32xf32>
    %43 = arith.addf %41, %42 : vector<8x32xf32>
    %44 = math.tanh %43 : vector<8x32xf32>
    %c0_20 = arith.constant 0 : index
    %c0_21 = arith.constant 0 : index
    %c0_22 = arith.constant 0 : index
    %45 = vector.load %arg12[%c0_20, %c0_21, %c0_22] : memref<2x8x32xf32, #tpu.memory_space<vmem>>, vector<1x8x32xf32>
    %46 = vector.shape_cast %45 : vector<1x8x32xf32> to vector<8x32xf32>
    %47 = vector.shape_cast %44 : vector<8x32xf32> to vector<1x8x32xf32>
    tpu.vector_store %arg12[%c0_20, %c0_21, %c0_22], %47 {strides = array<i32>} : memref<2x8x32xf32, #tpu.memory_space<vmem>>, vector<1x8x32xf32>,
    %48 = tpu.concatenate %16, %20, %24, %28, %32, %36, %40, %44 in 0 : vector<8x32xf32>, vector<8x32xf32>, vector<8x32xf32>, vector<8x32xf32>, vector<8x32xf32>, vector<8x32xf32>, vector<8x32xf32>, vector<8x32xf32> -> vector<64x32xf32>
    %c0_23 = arith.constant 0 : index
    %c0_24 = arith.constant 0 : index
    %49 = vector.load %arg6[%c0_23, %c0_24] : memref<32x32xf32, #tpu.memory_space<vmem>>, vector<32x32xf32>
    %c0_25 = arith.constant 0 : index
    %c0_26 = arith.constant 0 : index
    %50 = vector.load %arg7[%c0_25, %c0_26] : memref<32x32xf32, #tpu.memory_space<vmem>>, vector<32x32xf32>
    %c0_27 = arith.constant 0 : index
    %c0_28 = arith.constant 0 : index
    %51 = vector.load %arg8[%c0_27, %c0_28] : memref<1x32xf32, #tpu.memory_space<vmem>>, vector<1x32xf32>
    %cst_29 = arith.constant dense<0.000000e+00> : vector<64x32xf32>
    %52 = tpu.matmul %48, %49, %cst_29 {dimension_numbers = #tpu.dot_dimension_numbers<[1], [0], [0], [1], [0, 0, 1, 1], [], []>} : vector<64x32xf32>, vector<32x32xf32>, vector<64x32xf32> -> vector<64x32xf32>
    %53 = vector.broadcast %51 : vector<1x32xf32> to vector<64x32xf32>
    %54 = arith.addf %52, %53 : vector<64x32xf32>
    %c1 = arith.constant 1 : index
    %c0_30 = arith.constant 0 : index
    %c0_31 = arith.constant 0 : index
    %55 = vector.load %arg12[%c1, %c0_30, %c0_31] : memref<2x8x32xf32, #tpu.memory_space<vmem>>, vector<1x8x32xf32>
    %56 = vector.shape_cast %55 : vector<1x8x32xf32> to vector<8x32xf32>
    %57 = vector.extract_strided_slice %54 {offsets = [0, 0], sizes = [8, 32], strides = [1, 1]} : vector<64x32xf32> to vector<8x32xf32>
    %cst_32 = arith.constant dense<0.000000e+00> : vector<8x32xf32>
    %58 = tpu.matmul %56, %50, %cst_32 {dimension_numbers = #tpu.dot_dimension_numbers<[1], [0], [0], [1], [0, 0, 1, 1], [], []>} : vector<8x32xf32>, vector<32x32xf32>, vector<8x32xf32> -> vector<8x32xf32>
    %59 = arith.addf %57, %58 : vector<8x32xf32>
    %60 = math.tanh %59 : vector<8x32xf32>
    %61 = vector.extract_strided_slice %54 {offsets = [8, 0], sizes = [8, 32], strides = [1, 1]} : vector<64x32xf32> to vector<8x32xf32>
    %cst_33 = arith.constant dense<0.000000e+00> : vector<8x32xf32>
    %62 = tpu.matmul %60, %50, %cst_33 {dimension_numbers = #tpu.dot_dimension_numbers<[1], [0], [0], [1], [0, 0, 1, 1], [], []>} : vector<8x32xf32>, vector<32x32xf32>, vector<8x32xf32> -> vector<8x32xf32>
    %63 = arith.addf %61, %62 : vector<8x32xf32>
    %64 = math.tanh %63 : vector<8x32xf32>
    %65 = vector.extract_strided_slice %54 {offsets = [16, 0], sizes = [8, 32], strides = [1, 1]} : vector<64x32xf32> to vector<8x32xf32>
    %cst_34 = arith.constant dense<0.000000e+00> : vector<8x32xf32>
    %66 = tpu.matmul %64, %50, %cst_34 {dimension_numbers = #tpu.dot_dimension_numbers<[1], [0], [0], [1], [0, 0, 1, 1], [], []>} : vector<8x32xf32>, vector<32x32xf32>, vector<8x32xf32> -> vector<8x32xf32>
    %67 = arith.addf %65, %66 : vector<8x32xf32>
    %68 = math.tanh %67 : vector<8x32xf32>
    %69 = vector.extract_strided_slice %54 {offsets = [24, 0], sizes = [8, 32], strides = [1, 1]} : vector<64x32xf32> to vector<8x32xf32>
    %cst_35 = arith.constant dense<0.000000e+00> : vector<8x32xf32>
    %70 = tpu.matmul %68, %50, %cst_35 {dimension_numbers = #tpu.dot_dimension_numbers<[1], [0], [0], [1], [0, 0, 1, 1], [], []>} : vector<8x32xf32>, vector<32x32xf32>, vector<8x32xf32> -> vector<8x32xf32>
    %71 = arith.addf %69, %70 : vector<8x32xf32>
    %72 = math.tanh %71 : vector<8x32xf32>
    %73 = vector.extract_strided_slice %54 {offsets = [32, 0], sizes = [8, 32], strides = [1, 1]} : vector<64x32xf32> to vector<8x32xf32>
    %cst_36 = arith.constant dense<0.000000e+00> : vector<8x32xf32>
    %74 = tpu.matmul %72, %50, %cst_36 {dimension_numbers = #tpu.dot_dimension_numbers<[1], [0], [0], [1], [0, 0, 1, 1], [], []>} : vector<8x32xf32>, vector<32x32xf32>, vector<8x32xf32> -> vector<8x32xf32>
    %75 = arith.addf %73, %74 : vector<8x32xf32>
    %76 = math.tanh %75 : vector<8x32xf32>
    %77 = vector.extract_strided_slice %54 {offsets = [40, 0], sizes = [8, 32], strides = [1, 1]} : vector<64x32xf32> to vector<8x32xf32>
    %cst_37 = arith.constant dense<0.000000e+00> : vector<8x32xf32>
    %78 = tpu.matmul %76, %50, %cst_37 {dimension_numbers = #tpu.dot_dimension_numbers<[1], [0], [0], [1], [0, 0, 1, 1], [], []>} : vector<8x32xf32>, vector<32x32xf32>, vector<8x32xf32> -> vector<8x32xf32>
    %79 = arith.addf %77, %78 : vector<8x32xf32>
    %80 = math.tanh %79 : vector<8x32xf32>
    %81 = vector.extract_strided_slice %54 {offsets = [48, 0], sizes = [8, 32], strides = [1, 1]} : vector<64x32xf32> to vector<8x32xf32>
    %cst_38 = arith.constant dense<0.000000e+00> : vector<8x32xf32>
    %82 = tpu.matmul %80, %50, %cst_38 {dimension_numbers = #tpu.dot_dimension_numbers<[1], [0], [0], [1], [0, 0, 1, 1], [], []>} : vector<8x32xf32>, vector<32x32xf32>, vector<8x32xf32> -> vector<8x32xf32>
    %83 = arith.addf %81, %82 : vector<8x32xf32>
    %84 = math.tanh %83 : vector<8x32xf32>
    %85 = vector.extract_strided_slice %54 {offsets = [56, 0], sizes = [8, 32], strides = [1, 1]} : vector<64x32xf32> to vector<8x32xf32>
    %cst_39 = arith.constant dense<0.000000e+00> : vector<8x32xf32>
    %86 = tpu.matmul %84, %50, %cst_39 {dimension_numbers = #tpu.dot_dimension_numbers<[1], [0], [0], [1], [0, 0, 1, 1], [], []>} : vector<8x32xf32>, vector<32x32xf32>, vector<8x32xf32> -> vector<8x32xf32>
    %87 = arith.addf %85, %86 : vector<8x32xf32>
    %88 = math.tanh %87 : vector<8x32xf32>
    %c1_40 = arith.constant 1 : index
    %c0_41 = arith.constant 0 : index
    %c0_42 = arith.constant 0 : index
    %89 = vector.load %arg12[%c1_40, %c0_41, %c0_42] : memref<2x8x32xf32, #tpu.memory_space<vmem>>, vector<1x8x32xf32>
    %90 = vector.shape_cast %89 : vector<1x8x32xf32> to vector<8x32xf32>
    %91 = vector.shape_cast %88 : vector<8x32xf32> to vector<1x8x32xf32>
    tpu.vector_store %arg12[%c1_40, %c0_41, %c0_42], %91 {strides = array<i32>} : memref<2x8x32xf32, #tpu.memory_space<vmem>>, vector<1x8x32xf32>,
    %92 = tpu.concatenate %60, %64, %68, %72, %76, %80, %84, %88 in 0 : vector<8x32xf32>, vector<8x32xf32>, vector<8x32xf32>, vector<8x32xf32>, vector<8x32xf32>, vector<8x32xf32>, vector<8x32xf32>, vector<8x32xf32> -> vector<64x32xf32>
    %c0_43 = arith.constant 0 : index
    %c0_44 = arith.constant 0 : index
    %93 = vector.load %arg9[%c0_43, %c0_44] : memref<32x16xf32, #tpu.memory_space<vmem>>, vector<32x16xf32>
    %cst_45 = arith.constant dense<0.000000e+00> : vector<64x16xf32>
    %94 = tpu.matmul %92, %93, %cst_45 {dimension_numbers = #tpu.dot_dimension_numbers<[1], [0], [0], [1], [0, 0, 1, 1], [], []>} : vector<64x32xf32>, vector<32x16xf32>, vector<64x16xf32> -> vector<64x16xf32>
    %c0_46 = arith.constant 0 : index
    %c0_47 = arith.constant 0 : index
    %95 = vector.load %arg10[%c0_46, %c0_47] : memref<1x16xf32, #tpu.memory_space<vmem>>, vector<1x16xf32>
    %96 = vector.broadcast %95 : vector<1x16xf32> to vector<64x16xf32>
    %97 = arith.addf %94, %96 : vector<64x16xf32>
    %98 = vector.extract_strided_slice %97 {offsets = [0, 0], sizes = [8, 16], strides = [1, 1]} : vector<64x16xf32> to vector<8x16xf32>
    %c0_48 = arith.constant 0 : index
    %c0_49 = arith.constant 0 : index
    %c0_50 = arith.constant 0 : index
    %99 = vector.load %arg11[%c0_48, %c0_49, %c0_50] : memref<1x8x128xf32, #tpu.memory_space<vmem>>, vector<1x8x16xf32>
    %100 = vector.shape_cast %99 : vector<1x8x16xf32> to vector<8x16xf32>
    %101 = vector.shape_cast %98 : vector<8x16xf32> to vector<1x8x16xf32>
    tpu.vector_store %arg11[%c0_48, %c0_49, %c0_50], %101 {strides = array<i32>} : memref<1x8x128xf32, #tpu.memory_space<vmem>>, vector<1x8x16xf32>,
    %102 = vector.extract_strided_slice %97 {offsets = [8, 0], sizes = [8, 16], strides = [1, 1]} : vector<64x16xf32> to vector<8x16xf32>
    %c0_51 = arith.constant 0 : index
    %c0_52 = arith.constant 0 : index
    %c16 = arith.constant 16 : index
    %103 = vector.load %arg11[%c0_51, %c0_52, %c16] : memref<1x8x128xf32, #tpu.memory_space<vmem>>, vector<1x8x16xf32>
    %104 = vector.shape_cast %103 : vector<1x8x16xf32> to vector<8x16xf32>
    %105 = vector.shape_cast %102 : vector<8x16xf32> to vector<1x8x16xf32>
    tpu.vector_store %arg11[%c0_51, %c0_52, %c16], %105 {strides = array<i32>} : memref<1x8x128xf32, #tpu.memory_space<vmem>>, vector<1x8x16xf32>,
    %106 = vector.extract_strided_slice %97 {offsets = [16, 0], sizes = [8, 16], strides = [1, 1]} : vector<64x16xf32> to vector<8x16xf32>
    %c0_53 = arith.constant 0 : index
    %c0_54 = arith.constant 0 : index
    %c32 = arith.constant 32 : index
    %107 = vector.load %arg11[%c0_53, %c0_54, %c32] : memref<1x8x128xf32, #tpu.memory_space<vmem>>, vector<1x8x16xf32>
    %108 = vector.shape_cast %107 : vector<1x8x16xf32> to vector<8x16xf32>
    %109 = vector.shape_cast %106 : vector<8x16xf32> to vector<1x8x16xf32>
    tpu.vector_store %arg11[%c0_53, %c0_54, %c32], %109 {strides = array<i32>} : memref<1x8x128xf32, #tpu.memory_space<vmem>>, vector<1x8x16xf32>,
    %110 = vector.extract_strided_slice %97 {offsets = [24, 0], sizes = [8, 16], strides = [1, 1]} : vector<64x16xf32> to vector<8x16xf32>
    %c0_55 = arith.constant 0 : index
    %c0_56 = arith.constant 0 : index
    %c48 = arith.constant 48 : index
    %111 = vector.load %arg11[%c0_55, %c0_56, %c48] : memref<1x8x128xf32, #tpu.memory_space<vmem>>, vector<1x8x16xf32>
    %112 = vector.shape_cast %111 : vector<1x8x16xf32> to vector<8x16xf32>
    %113 = vector.shape_cast %110 : vector<8x16xf32> to vector<1x8x16xf32>
    tpu.vector_store %arg11[%c0_55, %c0_56, %c48], %113 {strides = array<i32>} : memref<1x8x128xf32, #tpu.memory_space<vmem>>, vector<1x8x16xf32>,
    %114 = vector.extract_strided_slice %97 {offsets = [32, 0], sizes = [8, 16], strides = [1, 1]} : vector<64x16xf32> to vector<8x16xf32>
    %c0_57 = arith.constant 0 : index
    %c0_58 = arith.constant 0 : index
    %c64 = arith.constant 64 : index
    %115 = vector.load %arg11[%c0_57, %c0_58, %c64] : memref<1x8x128xf32, #tpu.memory_space<vmem>>, vector<1x8x16xf32>
    %116 = vector.shape_cast %115 : vector<1x8x16xf32> to vector<8x16xf32>
    %117 = vector.shape_cast %114 : vector<8x16xf32> to vector<1x8x16xf32>
    tpu.vector_store %arg11[%c0_57, %c0_58, %c64], %117 {strides = array<i32>} : memref<1x8x128xf32, #tpu.memory_space<vmem>>, vector<1x8x16xf32>,
    %118 = vector.extract_strided_slice %97 {offsets = [40, 0], sizes = [8, 16], strides = [1, 1]} : vector<64x16xf32> to vector<8x16xf32>
    %c0_59 = arith.constant 0 : index
    %c0_60 = arith.constant 0 : index
    %c80 = arith.constant 80 : index
    %119 = vector.load %arg11[%c0_59, %c0_60, %c80] : memref<1x8x128xf32, #tpu.memory_space<vmem>>, vector<1x8x16xf32>
    %120 = vector.shape_cast %119 : vector<1x8x16xf32> to vector<8x16xf32>
    %121 = vector.shape_cast %118 : vector<8x16xf32> to vector<1x8x16xf32>
    tpu.vector_store %arg11[%c0_59, %c0_60, %c80], %121 {strides = array<i32>} : memref<1x8x128xf32, #tpu.memory_space<vmem>>, vector<1x8x16xf32>,
    %122 = vector.extract_strided_slice %97 {offsets = [48, 0], sizes = [8, 16], strides = [1, 1]} : vector<64x16xf32> to vector<8x16xf32>
    %c0_61 = arith.constant 0 : index
    %c0_62 = arith.constant 0 : index
    %c96 = arith.constant 96 : index
    %123 = vector.load %arg11[%c0_61, %c0_62, %c96] : memref<1x8x128xf32, #tpu.memory_space<vmem>>, vector<1x8x16xf32>
    %124 = vector.shape_cast %123 : vector<1x8x16xf32> to vector<8x16xf32>
    %125 = vector.shape_cast %122 : vector<8x16xf32> to vector<1x8x16xf32>
    tpu.vector_store %arg11[%c0_61, %c0_62, %c96], %125 {strides = array<i32>} : memref<1x8x128xf32, #tpu.memory_space<vmem>>, vector<1x8x16xf32>,
    %126 = vector.extract_strided_slice %97 {offsets = [56, 0], sizes = [8, 16], strides = [1, 1]} : vector<64x16xf32> to vector<8x16xf32>
    %c0_63 = arith.constant 0 : index
    %c0_64 = arith.constant 0 : index
    %c112 = arith.constant 112 : index
    %127 = vector.load %arg11[%c0_63, %c0_64, %c112] : memref<1x8x128xf32, #tpu.memory_space<vmem>>, vector<1x8x16xf32>
    %128 = vector.shape_cast %127 : vector<1x8x16xf32> to vector<8x16xf32>
    %129 = vector.shape_cast %126 : vector<8x16xf32> to vector<1x8x16xf32>
    tpu.vector_store %arg11[%c0_63, %c0_64, %c112], %129 {strides = array<i32>} : memref<1x8x128xf32, #tpu.memory_space<vmem>>, vector<1x8x16xf32>,
    return
  }
  func.func @transform_0(%arg0: i32, %arg1: i32) -> (i32, i32, i32) {
    %c0_i32 = arith.constant 0 : i32
    %c0_i32_0 = arith.constant 0 : i32
    return %arg0, %arg1, %c0_i32 : i32, i32, i32
  }
  func.func @transform_1(%arg0: i32, %arg1: i32) -> (i32, i32) {
    %c0_i32 = arith.constant 0 : i32
    %c0_i32_0 = arith.constant 0 : i32
    %c0_i32_1 = arith.constant 0 : i32
    return %c0_i32, %c0_i32_0 : i32, i32
  }
  func.func @transform_2(%arg0: i32, %arg1: i32) -> (i32, i32) {
    %c0_i32 = arith.constant 0 : i32
    %c0_i32_0 = arith.constant 0 : i32
    %c0_i32_1 = arith.constant 0 : i32
    return %c0_i32, %c0_i32_0 : i32, i32
  }
  func.func @transform_3(%arg0: i32, %arg1: i32) -> (i32, i32) {
    %c0_i32 = arith.constant 0 : i32
    %c0_i32_0 = arith.constant 0 : i32
    %c0_i32_1 = arith.constant 0 : i32
    return %c0_i32, %c0_i32_0 : i32, i32
  }
  func.func @transform_4(%arg0: i32, %arg1: i32) -> (i32, i32) {
    %c0_i32 = arith.constant 0 : i32
    %c0_i32_0 = arith.constant 0 : i32
    %c0_i32_1 = arith.constant 0 : i32
    return %c0_i32, %c0_i32_0 : i32, i32
  }
  func.func @transform_5(%arg0: i32, %arg1: i32) -> (i32, i32) {
    %c0_i32 = arith.constant 0 : i32
    %c0_i32_0 = arith.constant 0 : i32
    %c0_i32_1 = arith.constant 0 : i32
    return %c0_i32, %c0_i32_0 : i32, i32
  }
  func.func @transform_6(%arg0: i32, %arg1: i32) -> (i32, i32) {
    %c0_i32 = arith.constant 0 : i32
    %c0_i32_0 = arith.constant 0 : i32
    %c0_i32_1 = arith.constant 0 : i32
    return %c0_i32, %c0_i32_0 : i32, i32
  }
  func.func @transform_7(%arg0: i32, %arg1: i32) -> (i32, i32) {
    %c0_i32 = arith.constant 0 : i32
    %c0_i32_0 = arith.constant 0 : i32
    %c0_i32_1 = arith.constant 0 : i32
    return %c0_i32, %c0_i32_0 : i32, i32
  }
  func.func @transform_8(%arg0: i32, %arg1: i32) -> (i32, i32) {
    %c0_i32 = arith.constant 0 : i32
    %c0_i32_0 = arith.constant 0 : i32
    %c0_i32_1 = arith.constant 0 : i32
    return %c0_i32, %c0_i32_0 : i32, i32
  }
  func.func @transform_9(%arg0: i32, %arg1: i32) -> (i32, i32, i32) {
    %c0_i32 = arith.constant 0 : i32
    %c0_i32_0 = arith.constant 0 : i32
    return %arg0, %c0_i32, %arg1 : i32, i32, i32
  }
}

</mosaic_0001>

<llo_original>
// kernel: tpu_custom_call.1
$region0: #{tpu_custom_call.1}
  #allocation0 [shape = 'u32[]', space=smem, size = 0x4, offset = 0x4, fixed_abs, tag = 'smem constant byte address 0x4 - core index']
  #allocation1 [shape = 'u32[72,128]{1,0:T(1,128)}', space=vmem, size = 0x9000, scoped, tag = 'internal scratch']
  #allocation2 [shape = 'f32[2,8,32]{2,1,0:T(8,128)}', space=vmem, size = 0x2000, scoped, tag = 'scratch operand']
  %s0 = inlined_call_operand.vmem [shape: f32[1,64,32], index: 0, kind: input, shape index: {}]
  %s1 = inlined_call_operand.vmem [shape: f32[32,32], index: 1, kind: input, shape index: {}]
  %s2 = inlined_call_operand.vmem [shape: f32[32,32], index: 2, kind: input, shape index: {}]
  %s3 = inlined_call_operand.vmem [shape: f32[1,32], index: 3, kind: input, shape index: {}]
  %s4 = inlined_call_operand.vmem [shape: f32[32,32], index: 4, kind: input, shape index: {}]
  %s5 = inlined_call_operand.hbm [shape: f32[32,32], index: 5, kind: input, shape index: {}]
  %s6 = inlined_call_operand.vmem [shape: f32[1,32], index: 6, kind: input, shape index: {}]
  %s7 = inlined_call_operand.vmem [shape: f32[32,16], index: 7, kind: input, shape index: {}]
  %s8 = inlined_call_operand.vmem [shape: f32[1,16], index: 8, kind: input, shape index: {}]
  %s9 = inlined_call_operand.hbm [shape: f32[1,8,128], index: 9, kind: output, shape index: {}]
  %s10 = sld [smem:[#allocation0]]
  $region54: #{tpu_custom_call.1} parent=0
    _
  %s12 = ssub.s32 1, %s10
  %s13 = scalar_select 0, %s12, %s10
  $region1: #{tpu_custom_call.1} parent=0
    #allocation3 [shape = 'u8[16384]{0}', space=vmem, size = 0x4000, scoped, tag = 'input window, operand 5, single buffered']
    #allocation4 [shape = 's32[1]{0}', space=sflag, size = 0x4, scoped, tag = 'scoped memory for tpu_custom_call.1']
    #allocation5 [shape = 's32[1]{0}', space=sflag, size = 0x4, scoped, tag = 'scoped memory for tpu_custom_call.1']
    #allocation6 [shape = 'u8[4096]{0}', space=vmem, size = 0x1000, scoped, tag = 'output window, operand 0, single buffered']
    %14 = vsyncpa [#allocation4], 0
    %15 = vsyncpa [#allocation5], 0
    // Predicated region
    $region2: #{tpu_custom_call.1} parent=1 // pred_check
      _
    $region3: #{tpu_custom_call.1} parent=1 // pred_check_branch
      %17 = sbr.rel (0) target = $region5
    $region4: #{tpu_custom_call.1} parent=1 // pred_region
      _
    $region5: #{tpu_custom_call.1} parent=1 // pred_fallthru
      _
    // Predicated region
    $region6: #{tpu_custom_call.1} parent=1 // pred_check
      _
    $region7: #{tpu_custom_call.1} parent=1 // pred_check_branch
      %19 = sbr.rel (0) target = $region9
    $region8: #{tpu_custom_call.1} parent=1 // pred_region
      _
    $region9: #{tpu_custom_call.1} parent=1 // pred_fallthru
      _
    // Predicated region
    $region10: #{tpu_custom_call.1} parent=1 // pred_check
      _
    $region11: #{tpu_custom_call.1} parent=1 // pred_check_branch
      %21 = sbr.rel (0) target = $region13
    $region12: #{tpu_custom_call.1} parent=1 // pred_region
      _
    $region13: #{tpu_custom_call.1} parent=1 // pred_fallthru
      _
    // Predicated region
    $region14: #{tpu_custom_call.1} parent=1 // pred_check
      _
    $region15: #{tpu_custom_call.1} parent=1 // pred_check_branch
      %23 = sbr.rel (0) target = $region17
    $region16: #{tpu_custom_call.1} parent=1 // pred_region
      _
    $region17: #{tpu_custom_call.1} parent=1 // pred_fallthru
      _
    // Predicated region
    $region18: #{tpu_custom_call.1} parent=1 // pred_check
      _
    $region19: #{tpu_custom_call.1} parent=1 // pred_check_branch
      %25 = sbr.rel (0) target = $region21
    $region20: #{tpu_custom_call.1} parent=1 // pred_region
      _
    $region21: #{tpu_custom_call.1} parent=1 // pred_fallthru
      _
    // Predicated region
    $region22: #{tpu_custom_call.1} parent=1 // pred_check
      _
    $region23: #{tpu_custom_call.1} parent=1 // pred_check_branch
      %27 = sbr.rel (0) target = $region25
    $region24: #{tpu_custom_call.1} parent=1 // pred_region
      %29 = vsyncadd [#allocation4], 0
      %s30 = sshll.u32 %s5, 4
      %s31 = int_to_ptr.hbm [resolvable:$true] %s30
      %s32 = sshll.u32 [#allocation3], 4
      %s33 = int_to_ptr.vmem [resolvable:$true] %s32
      %38 = dma.hbm_to_vmem [thread:$0]  %s31, 512, %s33, [#allocation4], 128, 128, 8
    $region25: #{tpu_custom_call.1} parent=1 // pred_fallthru
      _
    // Predicated region
    $region26: #{tpu_custom_call.1} parent=1 // pred_check
      _
    $region27: #{tpu_custom_call.1} parent=1 // pred_check_branch
      %40 = sbr.rel (0) target = $region29
    $region28: #{tpu_custom_call.1} parent=1 // pred_region
      _
    $region29: #{tpu_custom_call.1} parent=1 // pred_fallthru
      _
    // Predicated region
    $region30: #{tpu_custom_call.1} parent=1 // pred_check
      _
    $region31: #{tpu_custom_call.1} parent=1 // pred_check_branch
      %42 = sbr.rel (0) target = $region33
    $region32: #{tpu_custom_call.1} parent=1 // pred_region
      _
    $region33: #{tpu_custom_call.1} parent=1 // pred_fallthru
      _
    // Predicated region
    $region34: #{tpu_custom_call.1} parent=1 // pred_check
      _
    $region35: #{tpu_custom_call.1} parent=1 // pred_check_branch
      %44 = sbr.rel (0) target = $region37
    $region36: #{tpu_custom_call.1} parent=1 // pred_region
      _
    $region37: #{tpu_custom_call.1} parent=1 // pred_fallthru
      _
    // Predicated region
    $region38: #{tpu_custom_call.1} parent=1 // pred_check
      _
    $region39: #{tpu_custom_call.1} parent=1 // pred_check_branch
      %46 = sbr.rel (0) target = $region41
    $region40: #{tpu_custom_call.1} parent=1 // pred_region
      %48 = dma.done [#allocation4], 512
    $region41: #{tpu_custom_call.1} parent=1 // pred_fallthru
      _
    %p49 = scmp.eq.s32.totalorder 0, 0
    // Predicated region
    $region42: #{tpu_custom_call.1} parent=1 // pred_check
      %p50 = pneg %p49
    $region43: #{tpu_custom_call.1} parent=1 // pred_check_branch
      %52 = sbr.rel (%p50) target = $region45
    $region44: #{tpu_custom_call.1} parent=1 // pred_region
      %vm53 = vcmask 261120
      %54 = vst.msk [vmem:[#allocation2] sm:$0xff] %vm53, 0.0
      %55 = vst.msk [vmem:[#allocation2 + $0x8] sm:$0xff] %vm53, 0.0
    $region45: #{tpu_custom_call.1} parent=1 // pred_fallthru
      _
    %v56 = vld [vmem:[%s0] sm:$0xff]
    %v57 = vld [vmem:[%s0 + $0x8] sm:$0xff]
    %v58 = vld [vmem:[%s0 + $0x10] sm:$0xff]
    %v59 = vld [vmem:[%s0 + $0x18] sm:$0xff]
    %v60 = vld [vmem:[%s0 + $0x20] sm:$0xff]
    %v61 = vld [vmem:[%s0 + $0x28] sm:$0xff]
    %v62 = vld [vmem:[%s0 + $0x30] sm:$0xff]
    %v63 = vld [vmem:[%s0 + $0x38] sm:$0xff]
    %v64 = vld [vmem:[%s1] sm:$0xff]
    %v65 = vld [vmem:[%s1 + $0x8] sm:$0xff]
    %v66 = vld [vmem:[%s1 + $0x10] sm:$0xff]
    %v67 = vld [vmem:[%s1 + $0x18] sm:$0xff]
    %v68 = vld [vmem:[%s2] sm:$0xff]
    %v69 = vld [vmem:[%s2 + $0x8] sm:$0xff]
    %v70 = vld [vmem:[%s2 + $0x10] sm:$0xff]
    %v71 = vld [vmem:[%s2 + $0x18] sm:$0xff]
    %v72 = vld [vmem:[%s3] sm:$0x1]
    %v74 = vperm.slane %v72, 0
    %vm76 = vcmask 261120
    %v78 = vsel %vm76, %v56, 0
    %v81 = vsel %vm76, %v57, 0
    %v84 = vsel %vm76, %v58, 0
    %v87 = vsel %vm76, %v59, 0
    %v90 = vsel %vm76, %v60, 0
    %v93 = vsel %vm76, %v61, 0
    %v96 = vsel %vm76, %v62, 0
    %v99 = vsel %vm76, %v63, 0
    %101 = vmatpush.msra.mxu0 0.0
    %102 = vmatpush.msra.mxu0 0.0
    %103 = vmatpush.msra.mxu0 0.0
    %104 = vmatpush.msra.mxu0 0.0
    %105 = vmatpush.msra.mxu0 0.0
    %106 = vmatpush.msra.mxu0 0.0
    %107 = vmatpush.msra.mxu0 0.0
    %108 = vmatpush.msra.mxu0 0.0
    %109 = vmatpush.msra.mxu0 0.0
    %110 = vmatpush.msra.mxu0 0.0
    %111 = vmatpush.msra.mxu0 0.0
    %112 = vmatpush.msra.mxu0 0.0
    %113 = vmatpush.msra.mxu0 %v67
    %114 = vmatpush.msra.mxu0 %v66
    %115 = vmatpush.msra.mxu0 %v65
    %116 = vmatpush.msra.mxu0 %v64
    %117 = vmatmul.f32.gmra.mxu0 %v78
    %v118 = vpop.f32.mrf.mxu0
    %v119 = vadd.f32 %v74, %v118
    %120 = vmatmul.f32.gmra.mxu0 %v81
    %v121 = vpop.f32.mrf.mxu0
    %v122 = vadd.f32 %v74, %v121
    %123 = vmatmul.f32.gmra.mxu0 %v84
    %v124 = vpop.f32.mrf.mxu0
    %v125 = vadd.f32 %v74, %v124
    %126 = vmatmul.f32.gmra.mxu0 %v87
    %v127 = vpop.f32.mrf.mxu0
    %v128 = vadd.f32 %v74, %v127
    %129 = vmatmul.f32.gmra.mxu0 %v90
    %v130 = vpop.f32.mrf.mxu0
    %v131 = vadd.f32 %v74, %v130
    %132 = vmatmul.f32.gmra.mxu0 %v93
    %v133 = vpop.f32.mrf.mxu0
    %v134 = vadd.f32 %v74, %v133
    %135 = vmatmul.f32.gmra.mxu0 %v96
    %v136 = vpop.f32.mrf.mxu0
    %v137 = vadd.f32 %v74, %v136
    %138 = vmatmul.f32.gmra.mxu0 %v99
    %v139 = vpop.f32.mrf.mxu0
    %v140 = vadd.f32 %v74, %v139
    %141 = vdwg.mxu0
    %v142 = vld [vmem:[#allocation2] sm:$0xff]
    %v144 = vsel %vm76, %v142, 0
    %146 = vmatpush.msra.mxu0 0.0
    %147 = vmatpush.msra.mxu0 0.0
    %148 = vmatpush.msra.mxu0 0.0
    %149 = vmatpush.msra.mxu0 0.0
    %150 = vmatpush.msra.mxu0 0.0
    %151 = vmatpush.msra.mxu0 0.0
    %152 = vmatpush.msra.mxu0 0.0
    %153 = vmatpush.msra.mxu0 0.0
    %154 = vmatpush.msra.mxu0 0.0
    %155 = vmatpush.msra.mxu0 0.0
    %156 = vmatpush.msra.mxu0 0.0
    %157 = vmatpush.msra.mxu0 0.0
    %158 = vmatpush.msra.mxu0 %v71
    %159 = vmatpush.msra.mxu0 %v70
    %160 = vmatpush.msra.mxu0 %v69
    %161 = vmatpush.msra.mxu0 %v68
    %162 = vmatmul.f32.gmra.mxu0 %v144
    %v163 = vpop.f32.mrf.mxu0
    %v164 = vadd.f32 0.0, %v163
    %165 = vdwg.mxu0
    %v166 = vadd.f32 %v119, %v164
    %v167 = vtanh.pop %v166
    %v169 = vsel %vm76, %v167, 0
    %171 = vmatpush.msra.mxu0 0.0
    %172 = vmatpush.msra.mxu0 0.0
    %173 = vmatpush.msra.mxu0 0.0
    %174 = vmatpush.msra.mxu0 0.0
    %175 = vmatpush.msra.mxu0 0.0
    %176 = vmatpush.msra.mxu0 0.0
    %177 = vmatpush.msra.mxu0 0.0
    %178 = vmatpush.msra.mxu0 0.0
    %179 = vmatpush.msra.mxu0 0.0
    %180 = vmatpush.msra.mxu0 0.0
    %181 = vmatpush.msra.mxu0 0.0
    %182 = vmatpush.msra.mxu0 0.0
    %183 = vmatpush.msra.mxu0 %v71
    %184 = vmatpush.msra.mxu0 %v70
    %185 = vmatpush.msra.mxu0 %v69
    %186 = vmatpush.msra.mxu0 %v68
    %187 = vmatmul.f32.gmra.mxu0 %v169
    %v188 = vpop.f32.mrf.mxu0
    %v189 = vadd.f32 0.0, %v188
    %190 = vdwg.mxu0
    %v191 = vadd.f32 %v122, %v189
    %v192 = vtanh.pop %v191
    %v194 = vsel %vm76, %v192, 0
    %196 = vmatpush.msra.mxu0 0.0
    %197 = vmatpush.msra.mxu0 0.0
    %198 = vmatpush.msra.mxu0 0.0
    %199 = vmatpush.msra.mxu0 0.0
    %200 = vmatpush.msra.mxu0 0.0
    %201 = vmatpush.msra.mxu0 0.0
    %202 = vmatpush.msra.mxu0 0.0
    %203 = vmatpush.msra.mxu0 0.0
    %204 = vmatpush.msra.mxu0 0.0
    %205 = vmatpush.msra.mxu0 0.0
    %206 = vmatpush.msra.mxu0 0.0
    %207 = vmatpush.msra.mxu0 0.0
    %208 = vmatpush.msra.mxu0 %v71
    %209 = vmatpush.msra.mxu0 %v70
    %210 = vmatpush.msra.mxu0 %v69
    %211 = vmatpush.msra.mxu0 %v68
    %212 = vmatmul.f32.gmra.mxu0 %v194
    %v213 = vpop.f32.mrf.mxu0
    %v214 = vadd.f32 0.0, %v213
    %215 = vdwg.mxu0
    %v216 = vadd.f32 %v125, %v214
    %v217 = vtanh.pop %v216
    %v219 = vsel %vm76, %v217, 0
    %221 = vmatpush.msra.mxu0 0.0
    %222 = vmatpush.msra.mxu0 0.0
    %223 = vmatpush.msra.mxu0 0.0
    %224 = vmatpush.msra.mxu0 0.0
    %225 = vmatpush.msra.mxu0 0.0
    %226 = vmatpush.msra.mxu0 0.0
    %227 = vmatpush.msra.mxu0 0.0
    %228 = vmatpush.msra.mxu0 0.0
    %229 = vmatpush.msra.mxu0 0.0
    %230 = vmatpush.msra.mxu0 0.0
    %231 = vmatpush.msra.mxu0 0.0
    %232 = vmatpush.msra.mxu0 0.0
    %233 = vmatpush.msra.mxu0 %v71
    %234 = vmatpush.msra.mxu0 %v70
    %235 = vmatpush.msra.mxu0 %v69
    %236 = vmatpush.msra.mxu0 %v68
    %237 = vmatmul.f32.gmra.mxu0 %v219
    %v238 = vpop.f32.mrf.mxu0
    %v239 = vadd.f32 0.0, %v238
    %240 = vdwg.mxu0
    %v241 = vadd.f32 %v128, %v239
    %v242 = vtanh.pop %v241
    %v244 = vsel %vm76, %v242, 0
    %246 = vmatpush.msra.mxu0 0.0
    %247 = vmatpush.msra.mxu0 0.0
    %248 = vmatpush.msra.mxu0 0.0
    %249 = vmatpush.msra.mxu0 0.0
    %250 = vmatpush.msra.mxu0 0.0
    %251 = vmatpush.msra.mxu0 0.0
    %252 = vmatpush.msra.mxu0 0.0
    %253 = vmatpush.msra.mxu0 0.0
    %254 = vmatpush.msra.mxu0 0.0
    %255 = vmatpush.msra.mxu0 0.0
    %256 = vmatpush.msra.mxu0 0.0
    %257 = vmatpush.msra.mxu0 0.0
    %258 = vmatpush.msra.mxu0 %v71
    %259 = vmatpush.msra.mxu0 %v70
    %260 = vmatpush.msra.mxu0 %v69
    %261 = vmatpush.msra.mxu0 %v68
    %262 = vmatmul.f32.gmra.mxu0 %v244
    %v263 = vpop.f32.mrf.mxu0
    %v264 = vadd.f32 0.0, %v263
    %265 = vdwg.mxu0
    %v266 = vadd.f32 %v131, %v264
    %v267 = vtanh.pop %v266
    %v269 = vsel %vm76, %v267, 0
    %271 = vmatpush.msra.mxu0 0.0
    %272 = vmatpush.msra.mxu0 0.0
    %273 = vmatpush.msra.mxu0 0.0
    %274 = vmatpush.msra.mxu0 0.0
    %275 = vmatpush.msra.mxu0 0.0
    %276 = vmatpush.msra.mxu0 0.0
    %277 = vmatpush.msra.mxu0 0.0
    %278 = vmatpush.msra.mxu0 0.0
    %279 = vmatpush.msra.mxu0 0.0
    %280 = vmatpush.msra.mxu0 0.0
    %281 = vmatpush.msra.mxu0 0.0
    %282 = vmatpush.msra.mxu0 0.0
    %283 = vmatpush.msra.mxu0 %v71
    %284 = vmatpush.msra.mxu0 %v70
    %285 = vmatpush.msra.mxu0 %v69
    %286 = vmatpush.msra.mxu0 %v68
    %287 = vmatmul.f32.gmra.mxu0 %v269
    %v288 = vpop.f32.mrf.mxu0
    %v289 = vadd.f32 0.0, %v288
    %290 = vdwg.mxu0
    %v291 = vadd.f32 %v134, %v289
    %v292 = vtanh.pop %v291
    %v294 = vsel %vm76, %v292, 0
    %296 = vmatpush.msra.mxu0 0.0
    %297 = vmatpush.msra.mxu0 0.0
    %298 = vmatpush.msra.mxu0 0.0
    %299 = vmatpush.msra.mxu0 0.0
    %300 = vmatpush.msra.mxu0 0.0
    %301 = vmatpush.msra.mxu0 0.0
    %302 = vmatpush.msra.mxu0 0.0
    %303 = vmatpush.msra.mxu0 0.0
    %304 = vmatpush.msra.mxu0 0.0
    %305 = vmatpush.msra.mxu0 0.0
    %306 = vmatpush.msra.mxu0 0.0
    %307 = vmatpush.msra.mxu0 0.0
    %308 = vmatpush.msra.mxu0 %v71
    %309 = vmatpush.msra.mxu0 %v70
    %310 = vmatpush.msra.mxu0 %v69
    %311 = vmatpush.msra.mxu0 %v68
    %312 = vmatmul.f32.gmra.mxu0 %v294
    %v313 = vpop.f32.mrf.mxu0
    %v314 = vadd.f32 0.0, %v313
    %315 = vdwg.mxu0
    %v316 = vadd.f32 %v137, %v314
    %v317 = vtanh.pop %v316
    %v319 = vsel %vm76, %v317, 0
    %321 = vmatpush.msra.mxu0 0.0
    %322 = vmatpush.msra.mxu0 0.0
    %323 = vmatpush.msra.mxu0 0.0
    %324 = vmatpush.msra.mxu0 0.0
    %325 = vmatpush.msra.mxu0 0.0
    %326 = vmatpush.msra.mxu0 0.0
    %327 = vmatpush.msra.mxu0 0.0
    %328 = vmatpush.msra.mxu0 0.0
    %329 = vmatpush.msra.mxu0 0.0
    %330 = vmatpush.msra.mxu0 0.0
    %331 = vmatpush.msra.mxu0 0.0
    %332 = vmatpush.msra.mxu0 0.0
    %333 = vmatpush.msra.mxu0 %v71
    %334 = vmatpush.msra.mxu0 %v70
    %335 = vmatpush.msra.mxu0 %v69
    %336 = vmatpush.msra.mxu0 %v68
    %337 = vmatmul.f32.gmra.mxu0 %v319
    %v338 = vpop.f32.mrf.mxu0
    %v339 = vadd.f32 0.0, %v338
    %340 = vdwg.mxu0
    %v341 = vadd.f32 %v140, %v339
    %v342 = vtanh.pop %v341
    %343 = vst.msk [vmem:[#allocation2] sm:$0xff] %vm76, %v342
    %v344 = vld [vmem:[%s4] sm:$0xff]
    %v345 = vld [vmem:[%s4 + $0x8] sm:$0xff]
    %v346 = vld [vmem:[%s4 + $0x10] sm:$0xff]
    %v347 = vld [vmem:[%s4 + $0x18] sm:$0xff]
    %v348 = vld [vmem:[#allocation3] sm:$0xff]
    %v349 = vld [vmem:[#allocation3 + $0x8] sm:$0xff]
    %v350 = vld [vmem:[#allocation3 + $0x10] sm:$0xff]
    %v351 = vld [vmem:[#allocation3 + $0x18] sm:$0xff]
    %v352 = vld [vmem:[%s6] sm:$0x1]
    %v354 = vperm.slane %v352, 0
    %v357 = vsel %vm76, %v342, 0
    %359 = vmatpush.msra.mxu0 0.0
    %360 = vmatpush.msra.mxu0 0.0
    %361 = vmatpush.msra.mxu0 0.0
    %362 = vmatpush.msra.mxu0 0.0
    %363 = vmatpush.msra.mxu0 0.0
    %364 = vmatpush.msra.mxu0 0.0
    %365 = vmatpush.msra.mxu0 0.0
    %366 = vmatpush.msra.mxu0 0.0
    %367 = vmatpush.msra.mxu0 0.0
    %368 = vmatpush.msra.mxu0 0.0
    %369 = vmatpush.msra.mxu0 0.0
    %370 = vmatpush.msra.mxu0 0.0
    %371 = vmatpush.msra.mxu0 %v347
    %372 = vmatpush.msra.mxu0 %v346
    %373 = vmatpush.msra.mxu0 %v345
    %374 = vmatpush.msra.mxu0 %v344
    %375 = vmatmul.f32.gmra.mxu0 %v169
    %v376 = vpop.f32.mrf.mxu0
    %v377 = vadd.f32 %v354, %v376
    %378 = vmatmul.f32.gmra.mxu0 %v194
    %v379 = vpop.f32.mrf.mxu0
    %v380 = vadd.f32 %v354, %v379
    %381 = vmatmul.f32.gmra.mxu0 %v219
    %v382 = vpop.f32.mrf.mxu0
    %v383 = vadd.f32 %v354, %v382
    %384 = vmatmul.f32.gmra.mxu0 %v244
    %v385 = vpop.f32.mrf.mxu0
    %v386 = vadd.f32 %v354, %v385
    %387 = vmatmul.f32.gmra.mxu0 %v269
    %v388 = vpop.f32.mrf.mxu0
    %v389 = vadd.f32 %v354, %v388
    %390 = vmatmul.f32.gmra.mxu0 %v294
    %v391 = vpop.f32.mrf.mxu0
    %v392 = vadd.f32 %v354, %v391
    %393 = vmatmul.f32.gmra.mxu0 %v319
    %v394 = vpop.f32.mrf.mxu0
    %v395 = vadd.f32 %v354, %v394
    %396 = vmatmul.f32.gmra.mxu0 %v357
    %v397 = vpop.f32.mrf.mxu0
    %v398 = vadd.f32 %v354, %v397
    %399 = vdwg.mxu0
    %s400 = scalar_lea.vmem [#allocation2], 8
    %v401 = vld [vmem:[%s400] sm:$0xff]
    %v403 = vsel %vm76, %v401, 0
    %405 = vmatpush.msra.mxu0 0.0
    %406 = vmatpush.msra.mxu0 0.0
    %407 = vmatpush.msra.mxu0 0.0
    %408 = vmatpush.msra.mxu0 0.0
    %409 = vmatpush.msra.mxu0 0.0
    %410 = vmatpush.msra.mxu0 0.0
    %411 = vmatpush.msra.mxu0 0.0
    %412 = vmatpush.msra.mxu0 0.0
    %413 = vmatpush.msra.mxu0 0.0
    %414 = vmatpush.msra.mxu0 0.0
    %415 = vmatpush.msra.mxu0 0.0
    %416 = vmatpush.msra.mxu0 0.0
    %417 = vmatpush.msra.mxu0 %v351
    %418 = vmatpush.msra.mxu0 %v350
    %419 = vmatpush.msra.mxu0 %v349
    %420 = vmatpush.msra.mxu0 %v348
    %421 = vmatmul.f32.gmra.mxu0 %v403
    %v422 = vpop.f32.mrf.mxu0
    %v423 = vadd.f32 0.0, %v422
    %424 = vdwg.mxu0
    %v425 = vadd.f32 %v377, %v423
    %v426 = vtanh.pop %v425
    %v428 = vsel %vm76, %v426, 0
    %430 = vmatpush.msra.mxu0 0.0
    %431 = vmatpush.msra.mxu0 0.0
    %432 = vmatpush.msra.mxu0 0.0
    %433 = vmatpush.msra.mxu0 0.0
    %434 = vmatpush.msra.mxu0 0.0
    %435 = vmatpush.msra.mxu0 0.0
    %436 = vmatpush.msra.mxu0 0.0
    %437 = vmatpush.msra.mxu0 0.0
    %438 = vmatpush.msra.mxu0 0.0
    %439 = vmatpush.msra.mxu0 0.0
    %440 = vmatpush.msra.mxu0 0.0
    %441 = vmatpush.msra.mxu0 0.0
    %442 = vmatpush.msra.mxu0 %v351
    %443 = vmatpush.msra.mxu0 %v350
    %444 = vmatpush.msra.mxu0 %v349
    %445 = vmatpush.msra.mxu0 %v348
    %446 = vmatmul.f32.gmra.mxu0 %v428
    %v447 = vpop.f32.mrf.mxu0
    %v448 = vadd.f32 0.0, %v447
    %449 = vdwg.mxu0
    %v450 = vadd.f32 %v380, %v448
    %v451 = vtanh.pop %v450
    %v453 = vsel %vm76, %v451, 0
    %455 = vmatpush.msra.mxu0 0.0
    %456 = vmatpush.msra.mxu0 0.0
    %457 = vmatpush.msra.mxu0 0.0
    %458 = vmatpush.msra.mxu0 0.0
    %459 = vmatpush.msra.mxu0 0.0
    %460 = vmatpush.msra.mxu0 0.0
    %461 = vmatpush.msra.mxu0 0.0
    %462 = vmatpush.msra.mxu0 0.0
    %463 = vmatpush.msra.mxu0 0.0
    %464 = vmatpush.msra.mxu0 0.0
    %465 = vmatpush.msra.mxu0 0.0
    %466 = vmatpush.msra.mxu0 0.0
    %467 = vmatpush.msra.mxu0 %v351
    %468 = vmatpush.msra.mxu0 %v350
    %469 = vmatpush.msra.mxu0 %v349
    %470 = vmatpush.msra.mxu0 %v348
    %471 = vmatmul.f32.gmra.mxu0 %v453
    %v472 = vpop.f32.mrf.mxu0
    %v473 = vadd.f32 0.0, %v472
    %474 = vdwg.mxu0
    %v475 = vadd.f32 %v383, %v473
    %v476 = vtanh.pop %v475
    %v478 = vsel %vm76, %v476, 0
    %480 = vmatpush.msra.mxu0 0.0
    %481 = vmatpush.msra.mxu0 0.0
    %482 = vmatpush.msra.mxu0 0.0
    %483 = vmatpush.msra.mxu0 0.0
    %484 = vmatpush.msra.mxu0 0.0
    %485 = vmatpush.msra.mxu0 0.0
    %486 = vmatpush.msra.mxu0 0.0
    %487 = vmatpush.msra.mxu0 0.0
    %488 = vmatpush.msra.mxu0 0.0
    %489 = vmatpush.msra.mxu0 0.0
    %490 = vmatpush.msra.mxu0 0.0
    %491 = vmatpush.msra.mxu0 0.0
    %492 = vmatpush.msra.mxu0 %v351
    %493 = vmatpush.msra.mxu0 %v350
    %494 = vmatpush.msra.mxu0 %v349
    %495 = vmatpush.msra.mxu0 %v348
    %496 = vmatmul.f32.gmra.mxu0 %v478
    %v497 = vpop.f32.mrf.mxu0
    %v498 = vadd.f32 0.0, %v497
    %499 = vdwg.mxu0
    %v500 = vadd.f32 %v386, %v498
    %v501 = vtanh.pop %v500
    %v503 = vsel %vm76, %v501, 0
    %505 = vmatpush.msra.mxu0 0.0
    %506 = vmatpush.msra.mxu0 0.0
    %507 = vmatpush.msra.mxu0 0.0
    %508 = vmatpush.msra.mxu0 0.0
    %509 = vmatpush.msra.mxu0 0.0
    %510 = vmatpush.msra.mxu0 0.0
    %511 = vmatpush.msra.mxu0 0.0
    %512 = vmatpush.msra.mxu0 0.0
    %513 = vmatpush.msra.mxu0 0.0
    %514 = vmatpush.msra.mxu0 0.0
    %515 = vmatpush.msra.mxu0 0.0
    %516 = vmatpush.msra.mxu0 0.0
    %517 = vmatpush.msra.mxu0 %v351
    %518 = vmatpush.msra.mxu0 %v350
    %519 = vmatpush.msra.mxu0 %v349
    %520 = vmatpush.msra.mxu0 %v348
    %521 = vmatmul.f32.gmra.mxu0 %v503
    %v522 = vpop.f32.mrf.mxu0
    %v523 = vadd.f32 0.0, %v522
    %524 = vdwg.mxu0
    %v525 = vadd.f32 %v389, %v523
    %v526 = vtanh.pop %v525
    %v528 = vsel %vm76, %v526, 0
    %530 = vmatpush.msra.mxu0 0.0
    %531 = vmatpush.msra.mxu0 0.0
    %532 = vmatpush.msra.mxu0 0.0
    %533 = vmatpush.msra.mxu0 0.0
    %534 = vmatpush.msra.mxu0 0.0
    %535 = vmatpush.msra.mxu0 0.0
    %536 = vmatpush.msra.mxu0 0.0
    %537 = vmatpush.msra.mxu0 0.0
    %538 = vmatpush.msra.mxu0 0.0
    %539 = vmatpush.msra.mxu0 0.0
    %540 = vmatpush.msra.mxu0 0.0
    %541 = vmatpush.msra.mxu0 0.0
    %542 = vmatpush.msra.mxu0 %v351
    %543 = vmatpush.msra.mxu0 %v350
    %544 = vmatpush.msra.mxu0 %v349
    %545 = vmatpush.msra.mxu0 %v348
    %546 = vmatmul.f32.gmra.mxu0 %v528
    %v547 = vpop.f32.mrf.mxu0
    %v548 = vadd.f32 0.0, %v547
    %549 = vdwg.mxu0
    %v550 = vadd.f32 %v392, %v548
    %v551 = vtanh.pop %v550
    %v553 = vsel %vm76, %v551, 0
    %555 = vmatpush.msra.mxu0 0.0
    %556 = vmatpush.msra.mxu0 0.0
    %557 = vmatpush.msra.mxu0 0.0
    %558 = vmatpush.msra.mxu0 0.0
    %559 = vmatpush.msra.mxu0 0.0
    %560 = vmatpush.msra.mxu0 0.0
    %561 = vmatpush.msra.mxu0 0.0
    %562 = vmatpush.msra.mxu0 0.0
    %563 = vmatpush.msra.mxu0 0.0
    %564 = vmatpush.msra.mxu0 0.0
    %565 = vmatpush.msra.mxu0 0.0
    %566 = vmatpush.msra.mxu0 0.0
    %567 = vmatpush.msra.mxu0 %v351
    %568 = vmatpush.msra.mxu0 %v350
    %569 = vmatpush.msra.mxu0 %v349
    %570 = vmatpush.msra.mxu0 %v348
    %571 = vmatmul.f32.gmra.mxu0 %v553
    %v572 = vpop.f32.mrf.mxu0
    %v573 = vadd.f32 0.0, %v572
    %574 = vdwg.mxu0
    %v575 = vadd.f32 %v395, %v573
    %v576 = vtanh.pop %v575
    %v578 = vsel %vm76, %v576, 0
    %580 = vmatpush.msra.mxu0 0.0
    %581 = vmatpush.msra.mxu0 0.0
    %582 = vmatpush.msra.mxu0 0.0
    %583 = vmatpush.msra.mxu0 0.0
    %584 = vmatpush.msra.mxu0 0.0
    %585 = vmatpush.msra.mxu0 0.0
    %586 = vmatpush.msra.mxu0 0.0
    %587 = vmatpush.msra.mxu0 0.0
    %588 = vmatpush.msra.mxu0 0.0
    %589 = vmatpush.msra.mxu0 0.0
    %590 = vmatpush.msra.mxu0 0.0
    %591 = vmatpush.msra.mxu0 0.0
    %592 = vmatpush.msra.mxu0 %v351
    %593 = vmatpush.msra.mxu0 %v350
    %594 = vmatpush.msra.mxu0 %v349
    %595 = vmatpush.msra.mxu0 %v348
    %596 = vmatmul.f32.gmra.mxu0 %v578
    %v597 = vpop.f32.mrf.mxu0
    %v598 = vadd.f32 0.0, %v597
    %599 = vdwg.mxu0
    %v600 = vadd.f32 %v398, %v598
    %v601 = vtanh.pop %v600
    %602 = vst.msk [vmem:[%s400] sm:$0xff] %vm76, %v601
    %v603 = vld [vmem:[%s7] sm:$0xff]
    %v604 = vld [vmem:[%s7 + $0x8] sm:$0xff]
    %v605 = vld [vmem:[%s7 + $0x10] sm:$0xff]
    %v606 = vld [vmem:[%s7 + $0x18] sm:$0xff]
    %v607 = vld [vmem:[%s8] sm:$0x1]
    %v609 = vperm.slane %v607, 0
    %v612 = vsel %vm76, %v601, 0
    %614 = vmatpush.msra.mxu0 0.0
    %615 = vmatpush.msra.mxu0 0.0
    %616 = vmatpush.msra.mxu0 0.0
    %617 = vmatpush.msra.mxu0 0.0
    %618 = vmatpush.msra.mxu0 0.0
    %619 = vmatpush.msra.mxu0 0.0
    %620 = vmatpush.msra.mxu0 0.0
    %621 = vmatpush.msra.mxu0 0.0
    %622 = vmatpush.msra.mxu0 0.0
    %623 = vmatpush.msra.mxu0 0.0
    %624 = vmatpush.msra.mxu0 0.0
    %625 = vmatpush.msra.mxu0 0.0
    %626 = vmatpush.msra.mxu0 %v606
    %627 = vmatpush.msra.mxu0 %v605
    %628 = vmatpush.msra.mxu0 %v604
    %629 = vmatpush.msra.mxu0 %v603
    %630 = vmatmul.f32.gmra.mxu0 %v428
    %v631 = vpop.f32.mrf.mxu0
    %v632 = vadd.f32 %v609, %v631
    %633 = vmatmul.f32.gmra.mxu0 %v453
    %v634 = vpop.f32.mrf.mxu0
    %v635 = vadd.f32 %v609, %v634
    %636 = vmatmul.f32.gmra.mxu0 %v478
    %v637 = vpop.f32.mrf.mxu0
    %v638 = vadd.f32 %v609, %v637
    %639 = vmatmul.f32.gmra.mxu0 %v503
    %v640 = vpop.f32.mrf.mxu0
    %v641 = vadd.f32 %v609, %v640
    %642 = vmatmul.f32.gmra.mxu0 %v528
    %v643 = vpop.f32.mrf.mxu0
    %v644 = vadd.f32 %v609, %v643
    %645 = vmatmul.f32.gmra.mxu0 %v553
    %v646 = vpop.f32.mrf.mxu0
    %v647 = vadd.f32 %v609, %v646
    %648 = vmatmul.f32.gmra.mxu0 %v578
    %v649 = vpop.f32.mrf.mxu0
    %v650 = vadd.f32 %v609, %v649
    %651 = vmatmul.f32.gmra.mxu0 %v612
    %v652 = vpop.f32.mrf.mxu0
    %v653 = vadd.f32 %v609, %v652
    %654 = vdwg.mxu0
    %vm655 = vcmask 130048
    %656 = vst.msk [vmem:[#allocation6] sm:$0xff] %vm655, %v632
    %658 = vrot.lane.b32.xlu0 %v635, 16
    %v659 = vpop.permute.xlu0 %658
    %vm661 = vcmask 261248
    %662 = vst.msk [vmem:[#allocation6] sm:$0xff] %vm661, %v659
    %664 = vrot.lane.b32.xlu0 %v638, 32
    %v665 = vpop.permute.xlu0 %664
    %vm667 = vcmask 392448
    %668 = vst.msk [vmem:[#allocation6] sm:$0xff] %vm667, %v665
    %670 = vrot.lane.b32.xlu0 %v641, 48
    %v671 = vpop.permute.xlu0 %670
    %vm673 = vcmask 523648
    %674 = vst.msk [vmem:[#allocation6] sm:$0xff] %vm673, %v671
    %676 = vrot.lane.b32.xlu0 %v644, 64
    %v677 = vpop.permute.xlu0 %676
    %vm679 = vcmask 654848
    %680 = vst.msk [vmem:[#allocation6] sm:$0xff] %vm679, %v677
    %682 = vrot.lane.b32.xlu0 %v647, 80
    %v683 = vpop.permute.xlu0 %682
    %vm685 = vcmask 786048
    %686 = vst.msk [vmem:[#allocation6] sm:$0xff] %vm685, %v683
    %688 = vrot.lane.b32.xlu0 %v650, 96
    %v689 = vpop.permute.xlu0 %688
    %vm691 = vcmask 917248
    %692 = vst.msk [vmem:[#allocation6] sm:$0xff] %vm691, %v689
    %694 = vrot.lane.b32.xlu0 %v653, 112
    %v695 = vpop.permute.xlu0 %694
    %vm697 = vcmask 1048448
    %698 = vst.msk [vmem:[#allocation6] sm:$0xff] %vm697, %v695
    // Predicated region
    $region46: #{tpu_custom_call.1} parent=1 // pred_check
      _
    $region47: #{tpu_custom_call.1} parent=1 // pred_check_branch
      %700 = sbr.rel (0) target = $region49
    $region48: #{tpu_custom_call.1} parent=1 // pred_region
      %702 = vsyncadd [#allocation5], 0
      %s704 = sshll.u32 [#allocation6], 4
      %s705 = int_to_ptr.vmem [resolvable:$true] %s704
      %s706 = sshll.u32 %s9, 4
      %s707 = int_to_ptr.hbm [resolvable:$true] %s706
      %709 = dma.vmem_to_hbm [thread:$0]  %s705, 128, %s707, [#allocation5]
    $region49: #{tpu_custom_call.1} parent=1 // pred_fallthru
      _
    // Predicated region
    $region50: #{tpu_custom_call.1} parent=1 // pred_check
      _
    $region51: #{tpu_custom_call.1} parent=1 // pred_check_branch
      %711 = sbr.rel (0) target = $region53
    $region52: #{tpu_custom_call.1} parent=1 // pred_region
      %713 = dma.done [#allocation5], 128
    $region53: #{tpu_custom_call.1} parent=1 // pred_fallthru
      _
    %714 = vsyncpa [#allocation4], 1
    %715 = vsyncpa [#allocation5], 1

</llo_original>
